<compile_context>
chip_gen: v6e
topology: v6e:2x2x1
jax: 0.10.0
libtpu: 0.0.40
codegen_flags: <defaults>
</compile_context>

<pallas_src>
import math

import jax
import jax.numpy as jnp
from jax.experimental import pallas as pl
from jax.experimental.pallas import tpu as pltpu


# ---------------------------------------------------------------------------
# Kernel body: one fused multiply-add per element, casts ride the (idle) VPU.
# ---------------------------------------------------------------------------
def _res_add_kernel(factors_ref, xm_ref, x_ref, o_ref):
    mf = factors_ref[0]          # SMEM scalar: module_factor
    in_f = factors_ref[1]        # SMEM scalar: input_factor
    acc = xm_ref[...].astype(jnp.float32) * mf + x_ref[...].astype(jnp.float32) * in_f
    o_ref[...] = acc.astype(o_ref.dtype)


# ---------------------------------------------------------------------------
# Layout / tiling helpers
# ---------------------------------------------------------------------------
def _sublane_packing(dtype):
    """Rows per 32-bit sublane word: 8 for f32, 16 for bf16, 32 for int8/fp8."""
    bits = jnp.dtype(dtype).itemsize * 8
    return max(8, (32 // bits) * 8)


def _vmem_limit_bytes():
    """Per-generation VMEM budget: half of physical capacity, capped at 64 MiB."""
    try:
        cap = pltpu.get_tpu_info().vmem_capacity_bytes
    except Exception:
        cap = 64 << 20  # conservative (v7x-sized) fallback
    return int(min(cap // 2, 64 << 20))


def _choose_lane_dim(total, last_dim, packing):
    """Pick a lane-dense last dim (multiple of 128) for the flattened view."""
    if total % 128 != 0:
        return last_dim  # fall back to the original minor dim
    candidates = (2048, 1024, 512, 256, 128)
    for cand in candidates:            # prefer wide lanes *and* full sublanes
        if total % cand == 0 and total // cand >= packing:
            return cand
    for cand in candidates:            # tiny tensors: just make it lane-dense
        if total % cand == 0:
            return cand
    return last_dim


def _choose_tile_m(M, tile_n, itemsize, packing, target_bytes):
    """Row-tile: packing-multiple, ~target_bytes, >=2 (ideally >=8) grid steps."""
    bytes_per_row = max(1, tile_n * itemsize)
    budget_rows = max(packing, (target_bytes // bytes_per_row) // packing * packing)
    # Megacore (v7x: 2 TCs share HBM): prefer >=8 grid steps, but never shrink
    # a block below ~256 KiB (per-step overhead amortization).
    floor_rows = max(packing, ((256 << 10) // bytes_per_row) // packing * packing)
    cap_rows = budget_rows
    for steps in (8, 4, 2):
        cand = ((M + steps - 1) // steps + packing - 1) // packing * packing
        if cand >= floor_rows:
            cap_rows = cand
            break
    tile_m = min(budget_rows, cap_rows)
    if tile_m >= M:
        return M  # single full-extent block (always a legal block shape)
    return tile_m


# ---------------------------------------------------------------------------
# Wrapper
# ---------------------------------------------------------------------------
def res_connect_add_pallas(x_module, x, module_factor=1.0, input_factor=1.0,
                           donate_x_module=False):
    """out = x_module * module_factor + x * input_factor (any matching shape)."""
    assert x_module.shape == x.shape, "residual operands must match in shape"
    orig_shape = x.shape

    out_dtype = jnp.promote_types(x_module.dtype, x.dtype)
    if not jnp.issubdtype(out_dtype, jnp.floating):
        # Match PyTorch float-scalar promotion (avoid silent integer truncation).
        out_dtype = jnp.float32

    total = int(math.prod(orig_shape)) if orig_shape else 1
    if total == 0:
        return jnp.zeros(orig_shape, out_dtype)

    dtypes = (x_module.dtype, x.dtype, out_dtype)
    itemsize = max(jnp.dtype(d).itemsize for d in dtypes)
    packing = max(_sublane_packing(d) for d in dtypes)

    # Layout-agnostic, lane-dense flattening (elementwise => layout is ours).
    last_dim = orig_shape[-1] if len(orig_shape) else 1
    N = _choose_lane_dim(total, last_dim, packing)
    M = total // N
    xm2 = x_module.reshape(M, N)   # no wrapper-side astype: cast in-kernel
    x2 = x.reshape(M, N)

    vmem_limit = _vmem_limit_bytes()
    target_bytes = max(1 << 20, vmem_limit // 16)  # 3 arrays x 2 bufs stay well under limit

    # Lanes: keep the full row (single contiguous slab) unless one packing-row
    # slab already exceeds the per-block budget (rare huge-minor-dim case).
    if packing * N * itemsize > target_bytes and N > 128:
        tile_n = min(N, max(128, (target_bytes // (packing * itemsize)) // 128 * 128))
    else:
        tile_n = N
    tile_m = _choose_tile_m(M, tile_n, itemsize, packing, target_bytes)

    if tile_n == N:
        grid = (pl.cdiv(M, tile_m),)
        spec = pl.BlockSpec((tile_m, tile_n), lambda i, f: (i, 0))
        dims = ("parallel",)
    else:
        grid = (pl.cdiv(M, tile_m), pl.cdiv(N, tile_n))
        spec = pl.BlockSpec((tile_m, tile_n), lambda i, j, f: (i, j))
        dims = ("parallel", "parallel")

    # Factors live in SMEM (scalar prefetch): works for traced/learned scalars,
    # no recompile when their values change.
    factors = jnp.stack([
        jnp.asarray(module_factor, dtype=jnp.float32).reshape(()),
        jnp.asarray(input_factor, dtype=jnp.float32).reshape(()),
    ])

    # Optionally donate x_module's buffer to the output (it is arg index 1:
    # factors occupy arg index 0).  Only legal when dtypes already match.
    io_aliases = {1: 0} if (donate_x_module and xm2.dtype == out_dtype) else {}

    out2 = pl.pallas_call(
        _res_add_kernel,
        out_shape=jax.ShapeDtypeStruct((M, N), out_dtype),
        grid_spec=pltpu.PrefetchScalarGridSpec(
            num_scalar_prefetch=1,
            grid=grid,
            in_specs=[spec, spec],
            out_specs=spec,
        ),
        compiler_params=pltpu.CompilerParams(
            dimension_semantics=dims,
            vmem_limit_bytes=vmem_limit,
        ),
        input_output_aliases=io_aliases,
    )(factors, xm2, x2)

    return out2.reshape(orig_shape)


class ResConnectAtt:
    """Residual connection for attention (Pallas-fused scaled add)."""

    def __init__(self, module, module_factor=1.0, input_factor=1.0):
        self.module = module
        self.module_factor = module_factor
        self.input_factor = input_factor

    def __call__(self, x, pos):
        # TODO(synk): the wrapped attention sub-module is arbitrary user code; the
        # ideal fusion is to fold this scaled add into its output epilogue — here
        # only the residual combine is kernelized.
        x_module, att, content_score, pos_score = self.module(x, pos)
        out = res_connect_add_pallas(
            x_module, x, self.module_factor, self.input_factor
        )
        return out, att, content_score, pos_score


def _toy_attention(x, pos):
    """Small deterministic stand-in for the wrapped attention module."""
    B, T, D = x.shape
    scale = 1.0 / jnp.sqrt(jnp.float32(D))
    content_score = jnp.einsum("btd,bsd->bts", x, x) * scale
    pos_score = jnp.einsum("btd,bsd->bts", x, pos) * scale
    att = jax.nn.softmax(content_score + pos_score, axis=-1)
    x_module = jnp.einsum("bts,bsd->btd", att, x).astype(x.dtype)
    return x_module, att, content_score, pos_score


if __name__ == "__main__":
    key = jax.random.PRNGKey(0)
    kx, kp = jax.random.split(key)

    # Shapes implied by the attention-style forward: (batch, seq, hidden).
    B, T, D = 2, 8, 32
    x = jax.random.normal(kx, (B, T, D), dtype=jnp.float32)
    pos = jax.random.normal(kp, (B, T, D), dtype=jnp.float32)

    module_factor, input_factor = 0.5, 1.0
    block = ResConnectAtt(_toy_attention, module_factor, input_factor)

    out, att, content_score, pos_score = block(x, pos)
    out = jax.block_until_ready(out)

    # Plain-JAX reference.
    xm_ref, att_ref, cs_ref, ps_ref = _toy_attention(x, pos)
    out_ref = xm_ref * module_factor + x * input_factor

    assert out.shape == x.shape and out.dtype == x.dtype
    assert jnp.allclose(out, out_ref, atol=1e-6, rtol=1e-6)
    assert jnp.allclose(att, att_ref)
    assert jnp.allclose(content_score, cs_ref)
    assert jnp.allclose(pos_score, ps_ref)

    # Lane-dense flattened path with a multi-step grid and a partial tail block.
    kx2, kp2 = jax.random.split(kp)
    x_big = jax.random.normal(kx2, (16, 120, 512), dtype=jnp.float32)
    xm_big = jax.random.normal(kp2, (16, 120, 512), dtype=jnp.float32)
    out_big = jax.block_until_ready(
        res_connect_add_pallas(xm_big, x_big, 0.25, 0.75)
    )
    assert jnp.allclose(out_big, xm_big * 0.25 + x_big * 0.75, atol=1e-6, rtol=1e-6)

    # bf16 path: in-kernel cast, 16-row sublane packing.
    kx3, kp3 = jax.random.split(kp2)
    x_bf = jax.random.normal(kx3, (4, 64, 256), dtype=jnp.bfloat16)
    xm_bf = jax.random.normal(kp3, (4, 64, 256), dtype=jnp.bfloat16)
    out_bf = jax.block_until_ready(
        res_connect_add_pallas(xm_bf, x_bf, 0.5, 0.5)
    )
    ref_bf = (xm_bf.astype(jnp.float32) * 0.5 + x_bf.astype(jnp.float32) * 0.5
              ).astype(jnp.bfloat16)
    assert out_bf.dtype == jnp.bfloat16
    assert jnp.allclose(out_bf.astype(jnp.float32), ref_bf.astype(jnp.float32),
                        atol=1e-2, rtol=1e-2)

    print("KERNEL_OK")
</pallas_src>

<mosaic_0001>
module attributes {stable_mosaic.version = 11 : i64} {
  func.func @_res_add_kernel(%arg0: i32, %arg1: memref<2xf32, #tpu.memory_space<smem>>, %arg2: memref<1x512xf32, #tpu.memory_space<vmem>>, %arg3: memref<1x512xf32, #tpu.memory_space<vmem>>, %arg4: memref<1x512xf32, #tpu.memory_space<vmem>>) attributes {dimension_semantics = [#tpu.dimension_semantics<parallel>], iteration_bounds = array<i64: 1>, scalar_prefetch = 1 : i64, scratch_operands = 0 : i64, tpu.core_type = #tpu.core_type<tc>, window_params = [{transform_indices = @transform_0, window_bounds = array<i64: 1, 512>}, {transform_indices = @transform_1, window_bounds = array<i64: 1, 512>}, {transform_indices = @transform_2, window_bounds = array<i64: 1, 512>}]} {
    %c0 = arith.constant 0 : index
    %0 = memref.load %arg1[%c0] : memref<2xf32, #tpu.memory_space<smem>>
    %c1 = arith.constant 1 : index
    %1 = memref.load %arg1[%c1] : memref<2xf32, #tpu.memory_space<smem>>
    %c0_0 = arith.constant 0 : index
    %c0_1 = arith.constant 0 : index
    %2 = vector.load %arg2[%c0_0, %c0_1] : memref<1x512xf32, #tpu.memory_space<vmem>>, vector<1x512xf32>
    %3 = vector.broadcast %0 : f32 to vector<1x512xf32>
    %4 = arith.mulf %2, %3 : vector<1x512xf32>
    %c0_2 = arith.constant 0 : index
    %c0_3 = arith.constant 0 : index
    %5 = vector.load %arg3[%c0_2, %c0_3] : memref<1x512xf32, #tpu.memory_space<vmem>>, vector<1x512xf32>
    %6 = vector.broadcast %1 : f32 to vector<1x512xf32>
    %7 = arith.mulf %5, %6 : vector<1x512xf32>
    %8 = arith.addf %4, %7 : vector<1x512xf32>
    %c0_4 = arith.constant 0 : index
    %c0_5 = arith.constant 0 : index
    %9 = vector.load %arg4[%c0_4, %c0_5] : memref<1x512xf32, #tpu.memory_space<vmem>>, vector<1x512xf32>
    tpu.vector_store %arg4[%c0_4, %c0_5], %8 {strides = array<i32>} : memref<1x512xf32, #tpu.memory_space<vmem>>, vector<1x512xf32>,
    return
  }
  func.func @transform_0(%arg0: i32, %arg1: memref<2xf32, #tpu.memory_space<smem>>) -> (i32, i32) {
    %c0_i32 = arith.constant 0 : i32
    %c0_i32_0 = arith.constant 0 : i32
    return %arg0, %c0_i32 : i32, i32
  }
  func.func @transform_1(%arg0: i32, %arg1: memref<2xf32, #tpu.memory_space<smem>>) -> (i32, i32) {
    %c0_i32 = arith.constant 0 : i32
    %c0_i32_0 = arith.constant 0 : i32
    return %arg0, %c0_i32 : i32, i32
  }
  func.func @transform_2(%arg0: i32, %arg1: memref<2xf32, #tpu.memory_space<smem>>) -> (i32, i32) {
    %c0_i32 = arith.constant 0 : i32
    %c0_i32_0 = arith.constant 0 : i32
    return %arg0, %c0_i32 : i32, i32
  }
}

</mosaic_0001>

<llo_original>
// kernel: tpu_custom_call.1
$region0: #{tpu_custom_call.1}
  #allocation0 [shape = 'u32[]', space=smem, size = 0x4, offset = 0x4, fixed_abs, tag = 'smem constant byte address 0x4 - core index']
  #allocation1 [shape = 'u32[144,128]{1,0:T(1,128)}', space=vmem, size = 0x12000, scoped, tag = 'internal scratch']
  #allocation2 [shape = 's32[1]{0}', space=sflag, size = 0x4, scoped, tag = 'scoped memory for tpu_custom_call.1']
  #allocation3 [shape = 'u8[512]{0}', space=smem, size = 0x200, scoped, tag = 'prefetched SMEM operand 0']
  %s0 = inlined_call_operand.hbm [shape: f32[2], index: 0, kind: input, shape index: {}]
  %s1 = inlined_call_operand.hbm [shape: f32[1,512], index: 1, kind: input, shape index: {}]
  %s2 = inlined_call_operand.hbm [shape: f32[1,512], index: 2, kind: input, shape index: {}]
  %s3 = inlined_call_operand.hbm [shape: f32[1,512], index: 3, kind: output, shape index: {}]
  %s4 = sld [smem:[#allocation0]]
  $region26: #{tpu_custom_call.1} parent=0
    _
  %s6 = ssub.s32 1, %s4
  %s7 = scalar_select 0, %s6, %s4
  %9 = dma.hbm_to_smem %s0, 16, [#allocation3], [#allocation2]
  %10 = dma.done [#allocation2], 16
  %11 = sfence
  $region1: #{tpu_custom_call.1} parent=0
    #allocation4 [shape = 'u8[2048]{0}', space=vmem, size = 0x800, scoped, tag = 'input window, operand 1, single buffered']
    #allocation5 [shape = 's32[1]{0}', space=sflag, size = 0x4, scoped, tag = 'scoped memory for tpu_custom_call.1']
    #allocation6 [shape = 's32[1]{0}', space=sflag, size = 0x4, scoped, tag = 'scoped memory for tpu_custom_call.1']
    #allocation7 [shape = 'u8[2048]{0}', space=vmem, size = 0x800, scoped, tag = 'input window, operand 2, single buffered']
    #allocation8 [shape = 's32[1]{0}', space=sflag, size = 0x4, scoped, tag = 'scoped memory for tpu_custom_call.1']
    #allocation9 [shape = 'u8[2048]{0}', space=vmem, size = 0x800, scoped, tag = 'output window, operand 0, single buffered']
    %12 = vsyncpa [#allocation5], 0
    %13 = vsyncpa [#allocation8], 0
    %14 = vsyncpa [#allocation6], 0
    // Predicated region
    $region2: #{tpu_custom_call.1} parent=1 // pred_check
      _
    $region3: #{tpu_custom_call.1} parent=1 // pred_check_branch
      %16 = sbr.rel (0) target = $region5
    $region4: #{tpu_custom_call.1} parent=1 // pred_region
      %s18 = ssub.s32 64, 64
      %19 = vsyncadd [#allocation5], %s18
      %s21 = sshll.u32 [#allocation4], 4
      %s22 = int_to_ptr.vmem [resolvable:$true] %s21
      %24 = dma.hbm_to_vmem [thread:$0]  %s1, 64, %s22, [#allocation5]
    $region5: #{tpu_custom_call.1} parent=1 // pred_fallthru
      _
    // Predicated region
    $region6: #{tpu_custom_call.1} parent=1 // pred_check
      _
    $region7: #{tpu_custom_call.1} parent=1 // pred_check_branch
      %26 = sbr.rel (0) target = $region9
    $region8: #{tpu_custom_call.1} parent=1 // pred_region
      %s28 = ssub.s32 64, 64
      %29 = vsyncadd [#allocation8], %s28
      %s31 = sshll.u32 [#allocation7], 4
      %s32 = int_to_ptr.vmem [resolvable:$true] %s31
      %34 = dma.hbm_to_vmem [thread:$0]  %s2, 64, %s32, [#allocation8]
    $region9: #{tpu_custom_call.1} parent=1 // pred_fallthru
      _
    // Predicated region
    $region10: #{tpu_custom_call.1} parent=1 // pred_check
      _
    $region11: #{tpu_custom_call.1} parent=1 // pred_check_branch
      %36 = sbr.rel (0) target = $region13
    $region12: #{tpu_custom_call.1} parent=1 // pred_region
      %37 = dma.done [#allocation5], 64
    $region13: #{tpu_custom_call.1} parent=1 // pred_fallthru
      _
    // Predicated region
    $region14: #{tpu_custom_call.1} parent=1 // pred_check
      _
    $region15: #{tpu_custom_call.1} parent=1 // pred_check_branch
      %39 = sbr.rel (0) target = $region17
    $region16: #{tpu_custom_call.1} parent=1 // pred_region
      %40 = dma.done [#allocation8], 64
    $region17: #{tpu_custom_call.1} parent=1 // pred_fallthru
      _
    %s41 = sld [smem:[#allocation3]]
    %s42 = sld [smem:[#allocation3 + $0x1]]
    %v43 = vld [vmem:[#allocation4] sm:$0xf]
    %v44 = vstv %s41
    %v45 = vmul.f32 %v43, %v44
    %v46 = vld [vmem:[#allocation7] sm:$0xf]
    %v47 = vstv %s42
    %v48 = vmul.f32 %v46, %v47
    %v49 = vadd.f32 %v45, %v48
    %v50 = vlaneseq
    %vm51 = vcmp.ge.s32.totalorder %v50, 0
    %vm52 = vcmp.lt.s32.totalorder %v50, 512
    %vm53 = vmand %vm51, %vm52
    %54 = vst.msk [vmem:[#allocation9] sm:$0xf] %vm53, %v49
    // Predicated region
    $region18: #{tpu_custom_call.1} parent=1 // pred_check
      _
    $region19: #{tpu_custom_call.1} parent=1 // pred_check_branch
      %56 = sbr.rel (0) target = $region21
    $region20: #{tpu_custom_call.1} parent=1 // pred_region
      %s58 = ssub.s32 64, 64
      %59 = vsyncadd [#allocation6], %s58
      %s61 = sshll.u32 [#allocation9], 4
      %s62 = int_to_ptr.vmem [resolvable:$true] %s61
      %64 = dma.vmem_to_hbm [thread:$0]  %s62, 64, %s3, [#allocation6]
    $region21: #{tpu_custom_call.1} parent=1 // pred_fallthru
      _
    // Predicated region
    $region22: #{tpu_custom_call.1} parent=1 // pred_check
      _
    $region23: #{tpu_custom_call.1} parent=1 // pred_check_branch
      %66 = sbr.rel (0) target = $region25
    $region24: #{tpu_custom_call.1} parent=1 // pred_region
      %67 = dma.done [#allocation6], 64
    $region25: #{tpu_custom_call.1} parent=1 // pred_fallthru
      _
    %68 = vsyncpa [#allocation5], 1
    %69 = vsyncpa [#allocation8], 1
    %70 = vsyncpa [#allocation6], 1

</llo_original>
